<compile_context>
chip_gen: v6e
topology: v6e:2x2x1
jax: 0.10.0
libtpu: 0.0.40
codegen_flags: <defaults>
</compile_context>

<pallas_src>
import jax
import jax.numpy as jnp
from jax.experimental import pallas as pl
from jax.experimental.pallas import tpu as pltpu


_LANE = 128
_FALLBACK_VMEM_CAP = 64 * 1024 * 1024   # v7x per-TensorCore capacity (worst case)


# --------------------------------------------------------------------------- #
# Kernels
# --------------------------------------------------------------------------- #
def _te_kernel_recompute(x_ref, w1_ref, b1_ref, w2_ref, b2_ref, o_ref):
    """One N-tile of Linear->SiLU->Linear; linear_1 recomputed per tile.

    x/w1/b1 have constant block indices (resident, single-buffered).  The
    per-tile recompute of linear_1 only touches B rows, hides under the w2
    tile DMA at small B, and keeps the N axis dependency-free so it can be
    marked "parallel" (shards across v7x's two TensorCores).
    """
    h = jnp.dot(x_ref[...], w1_ref[...], preferred_element_type=jnp.float32)
    h = h + b1_ref[...]                   # bias add in f32
    h = h * jax.nn.sigmoid(h)             # SiLU in f32 (EUP; v5e has no bf16 VPU)
    h = h.astype(w2_ref.dtype)            # bf16 only to feed the MXU
    o = jnp.dot(h, w2_ref[...], preferred_element_type=jnp.float32)
    o_ref[...] = (o + b2_ref[...]).astype(o_ref.dtype)


def _te_kernel_scratch_h(x_ref, w1_ref, b1_ref, w2_ref, b2_ref, o_ref, h_ref):
    """Large-B variant: h = SiLU(x @ w1 + b1) computed once into VMEM scratch."""
    @pl.when(pl.program_id(0) == 0)
    def _():
        h = jnp.dot(x_ref[...], w1_ref[...], preferred_element_type=jnp.float32)
        h = h + b1_ref[...]
        h = h * jax.nn.sigmoid(h)
        h_ref[...] = h.astype(h_ref.dtype)

    o = jnp.dot(h_ref[...], w2_ref[...], preferred_element_type=jnp.float32)
    o_ref[...] = (o + b2_ref[...]).astype(o_ref.dtype)


# --------------------------------------------------------------------------- #
# Tiling / VMEM budgeting helpers
# --------------------------------------------------------------------------- #
def _vmem_capacity_bytes():
    try:
        return int(pltpu.get_tpu_info().vmem_capacity_bytes)
    except Exception:       # no TPU info available -> assume the smallest (v7x)
        return _FALLBACK_VMEM_CAP


def _pick_tn(hid, b_pad, compute_bytes, out_bytes, resident_bytes, budget_bytes):
    """Largest lane-aligned N tile whose pipeline footprint fits the budget."""
    if hid % _LANE != 0:
        # TODO(synk): hid not a multiple of 128 -> single untiled w2 block.
        return hid

    def footprint(tn):
        per_tile = 2 * (hid * tn * compute_bytes + tn * 4 + b_pad * tn * out_bytes)
        return resident_bytes + per_tile

    cands = [tn for tn in (2048, 1024, 512, 256, 128)
             if tn <= hid and hid % tn == 0]
    # Never collapse to a single tile when hid allows >= 2 (keeps both v7x
    # TensorCores busy on the "parallel" axis).
    multi = [tn for tn in cands if hid // tn >= 2]
    cands = multi if multi else cands
    fitting = [tn for tn in cands if footprint(tn) <= budget_bytes]
    if not fitting:
        return _LANE
    best = fitting[0]
    # Prefer an even tile count so the two v7x TensorCores get equal work.
    if (hid // best) % 2 == 1 and best > _LANE:
        best //= 2
    return best


# --------------------------------------------------------------------------- #
# Public API
# --------------------------------------------------------------------------- #
def prepare_time_embedding_params(w1, b1, w2, b2, *, compute_dtype=jnp.bfloat16):
    """Cast / lay out the parameters ONCE, outside the per-call hot path.

    Expects w1: (dim, 4*dim), w2: (4*dim, 4*dim) stored (in_features,
    out_features).  Biases stay in f32 (added to the f32 MXU accumulator).
    """
    dim, hid = w1.shape
    assert w2.shape == (hid, hid), w2.shape
    return {
        "w1": jnp.asarray(w1, compute_dtype),
        "b1": jnp.reshape(jnp.asarray(b1, jnp.float32), (1, hid)),
        "w2": jnp.asarray(w2, compute_dtype),
        "b2": jnp.reshape(jnp.asarray(b2, jnp.float32), (1, hid)),
    }


def time_embedding(x, params, *, recompute_threshold=256):
    """Fused TimeEmbedding forward: SiLU(x @ w1 + b1) @ w2 + b2."""
    w1, b1, w2, b2 = params["w1"], params["b1"], params["w2"], params["b2"]
    B, dim = x.shape
    hid = w1.shape[1]
    assert w1.shape == (dim, hid) and w2.shape == (hid, hid)

    out_dtype = x.dtype
    compute_dtype = w1.dtype
    compute_bytes = jnp.dtype(compute_dtype).itemsize
    out_bytes = jnp.dtype(out_dtype).itemsize

    xc = x.astype(compute_dtype)          # tiny (B x dim); weights are NOT cast here

    # Pad the batch to the native sublane tile of the compute dtype
    # (16 rows for bf16, 8 for f32) so loads / MXU feeds stay unmasked.
    sub = 16 if compute_bytes == 2 else 8
    B_pad = ((B + sub - 1) // sub) * sub
    if B_pad != B:
        xc = jnp.pad(xc, ((0, B_pad - B), (0, 0)))

    # Small B: recompute linear_1 per N tile (axis stays "parallel").
    # Large B: compute h once into VMEM scratch (axis becomes "arbitrary").
    recompute = B_pad <= recompute_threshold

    cap = _vmem_capacity_bytes()
    resident = (B_pad * dim + dim * hid) * compute_bytes + hid * 4
    if not recompute:
        resident += B_pad * hid * compute_bytes           # h scratch
    tn = _pick_tn(hid, B_pad, compute_bytes, out_bytes,
                  resident, budget_bytes=int(0.7 * cap))
    num_tiles = hid // tn

    per_tile = 2 * (hid * tn * compute_bytes + tn * 4 + B_pad * tn * out_bytes)
    vmem_limit = int(min(cap, max(2 * (resident + per_tile) + (4 << 20), 32 << 20)))

    l1_reps = num_tiles if recompute else 1
    cost = pl.CostEstimate(
        flops=2 * B_pad * dim * hid * l1_reps + 2 * B_pad * hid * hid,
        transcendentals=B_pad * hid * l1_reps,
        bytes_accessed=(B_pad * dim * compute_bytes
                        + (dim * hid + hid * hid) * compute_bytes
                        + 2 * hid * 4
                        + B_pad * hid * out_bytes),
    )

    def build(single_buffer_residents):
        if single_buffer_residents:
            # Constant-index operands are fetched once and never revisited;
            # single-buffer them so they don't pay double-buffer VMEM (w1 is
            # the big one at realistic dims).
            def res_spec(shape):
                return pl.BlockSpec(shape, lambda j: (0, 0),
                                    pipeline_mode=pl.Buffered(1))
        else:
            def res_spec(shape):
                return pl.BlockSpec(shape, lambda j: (0, 0))

        in_specs = [
            res_spec((B_pad, dim)),                       # x   (resident)
            res_spec((dim, hid)),                         # w1  (resident)
            res_spec((1, hid)),                           # b1  (resident)
            pl.BlockSpec((hid, tn), lambda j: (0, j)),    # w2  N-tile
            pl.BlockSpec((1, tn), lambda j: (0, j)),      # b2  N-tile
        ]
        out_spec = pl.BlockSpec((B_pad, tn), lambda j: (0, j))

        if recompute:
            kernel, scratch, sem = _te_kernel_recompute, [], ("parallel",)
        else:
            kernel = _te_kernel_scratch_h
            scratch = [pltpu.VMEM((B_pad, hid), compute_dtype)]
            sem = ("arbitrary",)

        return pl.pallas_call(
            kernel,
            out_shape=jax.ShapeDtypeStruct((B_pad, hid), out_dtype),
            grid_spec=pltpu.PrefetchScalarGridSpec(
                num_scalar_prefetch=0,
                grid=(num_tiles,),
                in_specs=in_specs,
                out_specs=out_spec,
                scratch_shapes=scratch,
            ),
            compiler_params=pltpu.CompilerParams(
                dimension_semantics=sem,
                vmem_limit_bytes=vmem_limit,
            ),
            cost_estimate=cost,
        )

    try:
        out = build(single_buffer_residents=True)(xc, w1, b1, w2, b2)
    except Exception:
        # Fallback for jax versions where Buffered(1) is not lowerable on TPU.
        out = build(single_buffer_residents=False)(xc, w1, b1, w2, b2)

    return out[:B]


# --------------------------------------------------------------------------- #
# Demo / self-test
# --------------------------------------------------------------------------- #
def _torch_linear_init(key, fan_in, fan_out):
    """nn.Linear default init: U(-1/sqrt(fan_in), 1/sqrt(fan_in)); stored (in, out)."""
    kw, kb = jax.random.split(key)
    bound = 1.0 / (fan_in ** 0.5)
    w = jax.random.uniform(kw, (fan_in, fan_out), jnp.float32, -bound, bound)
    b = jax.random.uniform(kb, (fan_out,), jnp.float32, -bound, bound)
    return w, b


if __name__ == "__main__":
    dim = 32                 # TimeEmbedding(dim=32) -> hidden = 128
    hid = 4 * dim
    batch = 2

    key = jax.random.PRNGKey(0)
    kx, k1, k2 = jax.random.split(key, 3)
    x = jax.random.normal(kx, (batch, dim), jnp.float32)
    w1, b1 = _torch_linear_init(k1, dim, hid)
    w2, b2 = _torch_linear_init(k2, hid, hid)

    # Cast the weights to bf16 ONCE, outside the hot path.
    params = prepare_time_embedding_params(w1, b1, w2, b2)

    out = jax.block_until_ready(time_embedding(x, params))
    assert out.shape == (batch, hid)

    # Also exercise the large-B (scratch-h, "arbitrary" axis) code path.
    out2 = jax.block_until_ready(time_embedding(x, params, recompute_threshold=0))
    assert out2.shape == (batch, hid)

    # Reference with the same bf16 operands / f32 accumulation as the kernel.
    xb = x.astype(jnp.bfloat16)
    h_ref = jnp.dot(xb, params["w1"], preferred_element_type=jnp.float32) + params["b1"]
    h_ref = h_ref * jax.nn.sigmoid(h_ref)
    ref = jnp.dot(h_ref.astype(jnp.bfloat16), params["w2"],
                  preferred_element_type=jnp.float32) + params["b2"]
    ref = ref.astype(x.dtype)
    assert jnp.allclose(out, ref, atol=2e-3, rtol=2e-3)
    assert jnp.allclose(out2, ref, atol=2e-3, rtol=2e-3)

    # Loose sanity check against the pure-f32 math (bf16 weight quantization).
    h32 = x @ w1 + b1
    h32 = h32 * jax.nn.sigmoid(h32)
    ref32 = h32 @ w2 + b2
    assert jnp.allclose(out, ref32, atol=1e-1, rtol=1e-1)

    print("KERNEL_OK")
</pallas_src>

<mosaic_0001>
module attributes {stable_mosaic.version = 11 : i64} {
  func.func @_te_kernel_recompute(%arg0: i32, %arg1: memref<16x32xbf16, #tpu.memory_space<vmem>>, %arg2: memref<32x128xbf16, #tpu.memory_space<vmem>>, %arg3: memref<1x128xf32, #tpu.memory_space<vmem>>, %arg4: memref<128x128xbf16, #tpu.memory_space<vmem>>, %arg5: memref<1x128xf32, #tpu.memory_space<vmem>>, %arg6: memref<16x128xf32, #tpu.memory_space<vmem>>) attributes {dimension_semantics = [#tpu.dimension_semantics<parallel>], iteration_bounds = array<i64: 1>, scalar_prefetch = 0 : i64, scratch_operands = 0 : i64, tpu.core_type = #tpu.core_type<tc>, window_params = [{pipeline_mode = #tpu.pipeline_mode<synchronous>, transform_indices = @transform_0, window_bounds = array<i64: 16, 32>}, {pipeline_mode = #tpu.pipeline_mode<synchronous>, transform_indices = @transform_1, window_bounds = array<i64: 32, 128>}, {pipeline_mode = #tpu.pipeline_mode<synchronous>, transform_indices = @transform_2, window_bounds = array<i64: 1, 128>}, {transform_indices = @transform_3, window_bounds = array<i64: 128, 128>}, {transform_indices = @transform_4, window_bounds = array<i64: 1, 128>}, {transform_indices = @transform_5, window_bounds = array<i64: 16, 128>}]} {
    %c0 = arith.constant 0 : index
    %c0_0 = arith.constant 0 : index
    %0 = vector.load %arg1[%c0, %c0_0] : memref<16x32xbf16, #tpu.memory_space<vmem>>, vector<16x32xbf16>
    %c0_1 = arith.constant 0 : index
    %c0_2 = arith.constant 0 : index
    %1 = vector.load %arg2[%c0_1, %c0_2] : memref<32x128xbf16, #tpu.memory_space<vmem>>, vector<32x128xbf16>
    %cst = arith.constant dense<0.000000e+00> : vector<16x128xf32>
    %2 = tpu.matmul %0, %1, %cst {dimension_numbers = #tpu.dot_dimension_numbers<[1], [0], [0], [1], [0, 0, 1, 1], [], []>} : vector<16x32xbf16>, vector<32x128xbf16>, vector<16x128xf32> -> vector<16x128xf32>
    %c0_3 = arith.constant 0 : index
    %c0_4 = arith.constant 0 : index
    %3 = vector.load %arg3[%c0_3, %c0_4] : memref<1x128xf32, #tpu.memory_space<vmem>>, vector<1x128xf32>
    %4 = vector.broadcast %3 : vector<1x128xf32> to vector<16x128xf32>
    %5 = arith.addf %2, %4 : vector<16x128xf32>
    %6 = arith.negf %5 : vector<16x128xf32>
    %7 = math.exp %6 : vector<16x128xf32>
    %cst_5 = arith.constant 1.000000e+00 : f32
    %8 = vector.broadcast %cst_5 : f32 to vector<16x128xf32>
    %9 = arith.addf %8, %7 : vector<16x128xf32>
    %10 = arith.divf %8, %9 : vector<16x128xf32>
    %11 = arith.mulf %5, %10 : vector<16x128xf32>
    %12 = arith.truncf %11 : vector<16x128xf32> to vector<16x128xbf16>
    %c0_6 = arith.constant 0 : index
    %c0_7 = arith.constant 0 : index
    %13 = vector.load %arg4[%c0_6, %c0_7] : memref<128x128xbf16, #tpu.memory_space<vmem>>, vector<128x128xbf16>
    %cst_8 = arith.constant dense<0.000000e+00> : vector<16x128xf32>
    %14 = tpu.matmul %12, %13, %cst_8 {dimension_numbers = #tpu.dot_dimension_numbers<[1], [0], [0], [1], [0, 0, 1, 1], [], []>} : vector<16x128xbf16>, vector<128x128xbf16>, vector<16x128xf32> -> vector<16x128xf32>
    %c0_9 = arith.constant 0 : index
    %c0_10 = arith.constant 0 : index
    %15 = vector.load %arg5[%c0_9, %c0_10] : memref<1x128xf32, #tpu.memory_space<vmem>>, vector<1x128xf32>
    %16 = vector.broadcast %15 : vector<1x128xf32> to vector<16x128xf32>
    %17 = arith.addf %14, %16 : vector<16x128xf32>
    %c0_11 = arith.constant 0 : index
    %c0_12 = arith.constant 0 : index
    %18 = vector.load %arg6[%c0_11, %c0_12] : memref<16x128xf32, #tpu.memory_space<vmem>>, vector<16x128xf32>
    tpu.vector_store %arg6[%c0_11, %c0_12], %17 {strides = array<i32>} : memref<16x128xf32, #tpu.memory_space<vmem>>, vector<16x128xf32>,
    return
  }
  func.func @transform_0(%arg0: i32) -> (i32, i32) {
    %c0_i32 = arith.constant 0 : i32
    %c0_i32_0 = arith.constant 0 : i32
    %c0_i32_1 = arith.constant 0 : i32
    return %c0_i32, %c0_i32_0 : i32, i32
  }
  func.func @transform_1(%arg0: i32) -> (i32, i32) {
    %c0_i32 = arith.constant 0 : i32
    %c0_i32_0 = arith.constant 0 : i32
    %c0_i32_1 = arith.constant 0 : i32
    return %c0_i32, %c0_i32_0 : i32, i32
  }
  func.func @transform_2(%arg0: i32) -> (i32, i32) {
    %c0_i32 = arith.constant 0 : i32
    %c0_i32_0 = arith.constant 0 : i32
    %c0_i32_1 = arith.constant 0 : i32
    return %c0_i32, %c0_i32_0 : i32, i32
  }
  func.func @transform_3(%arg0: i32) -> (i32, i32) {
    %c0_i32 = arith.constant 0 : i32
    %c0_i32_0 = arith.constant 0 : i32
    return %c0_i32, %arg0 : i32, i32
  }
  func.func @transform_4(%arg0: i32) -> (i32, i32) {
    %c0_i32 = arith.constant 0 : i32
    %c0_i32_0 = arith.constant 0 : i32
    return %c0_i32, %arg0 : i32, i32
  }
  func.func @transform_5(%arg0: i32) -> (i32, i32) {
    %c0_i32 = arith.constant 0 : i32
    %c0_i32_0 = arith.constant 0 : i32
    return %c0_i32, %arg0 : i32, i32
  }
}

module attributes {stable_mosaic.version = 11 : i64} {
  func.func @_te_kernel_recompute(%arg0: i32, %arg1: memref<16x32xbf16, #tpu.memory_space<vmem>>, %arg2: memref<32x128xbf16, #tpu.memory_space<vmem>>, %arg3: memref<1x128xf32, #tpu.memory_space<vmem>>, %arg4: memref<128x128xbf16, #tpu.memory_space<vmem>>, %arg5: memref<1x128xf32, #tpu.memory_space<vmem>>, %arg6: memref<16x128xf32, #tpu.memory_space<vmem>>) attributes {dimension_semantics = [#tpu.dimension_semantics<parallel>], iteration_bounds = array<i64: 1>, scalar_prefetch = 0 : i64, scratch_operands = 0 : i64, tpu.core_type = #tpu.core_type<tc>, window_params = [{pipeline_mode = #tpu.pipeline_mode<synchronous>, transform_indices = @transform_0, window_bounds = array<i64: 16, 32>}, {pipeline_mode = #tpu.pipeline_mode<synchronous>, transform_indices = @transform_1, window_bounds = array<i64: 32, 128>}, {pipeline_mode = #tpu.pipeline_mode<synchronous>, transform_indices = @transform_2, window_bounds = array<i64: 1, 128>}, {transform_indices = @transform_3, window_bounds = array<i64: 128, 128>}, {transform_indices = @transform_4, window_bounds = array<i64: 1, 128>}, {transform_indices = @transform_5, window_bounds = array<i64: 16, 128>}]} {
    %c0 = arith.constant 0 : index
    %c0_0 = arith.constant 0 : index
    %0 = vector.load %arg1[%c0, %c0_0] : memref<16x32xbf16, #tpu.memory_space<vmem>>, vector<16x32xbf16>
    %c0_1 = arith.constant 0 : index
    %c0_2 = arith.constant 0 : index
    %1 = vector.load %arg2[%c0_1, %c0_2] : memref<32x128xbf16, #tpu.memory_space<vmem>>, vector<32x128xbf16>
    %cst = arith.constant dense<0.000000e+00> : vector<16x128xf32>
    %2 = tpu.matmul %0, %1, %cst {dimension_numbers = #tpu.dot_dimension_numbers<[1], [0], [0], [1], [0, 0, 1, 1], [], []>} : vector<16x32xbf16>, vector<32x128xbf16>, vector<16x128xf32> -> vector<16x128xf32>
    %c0_3 = arith.constant 0 : index
    %c0_4 = arith.constant 0 : index
    %3 = vector.load %arg3[%c0_3, %c0_4] : memref<1x128xf32, #tpu.memory_space<vmem>>, vector<1x128xf32>
    %4 = vector.broadcast %3 : vector<1x128xf32> to vector<16x128xf32>
    %5 = arith.addf %2, %4 : vector<16x128xf32>
    %6 = arith.negf %5 : vector<16x128xf32>
    %7 = math.exp %6 : vector<16x128xf32>
    %cst_5 = arith.constant 1.000000e+00 : f32
    %8 = vector.broadcast %cst_5 : f32 to vector<16x128xf32>
    %9 = arith.addf %8, %7 : vector<16x128xf32>
    %10 = arith.divf %8, %9 : vector<16x128xf32>
    %11 = arith.mulf %5, %10 : vector<16x128xf32>
    %12 = arith.truncf %11 : vector<16x128xf32> to vector<16x128xbf16>
    %c0_6 = arith.constant 0 : index
    %c0_7 = arith.constant 0 : index
    %13 = vector.load %arg4[%c0_6, %c0_7] : memref<128x128xbf16, #tpu.memory_space<vmem>>, vector<128x128xbf16>
    %cst_8 = arith.constant dense<0.000000e+00> : vector<16x128xf32>
    %14 = tpu.matmul %12, %13, %cst_8 {dimension_numbers = #tpu.dot_dimension_numbers<[1], [0], [0], [1], [0, 0, 1, 1], [], []>} : vector<16x128xbf16>, vector<128x128xbf16>, vector<16x128xf32> -> vector<16x128xf32>
    %c0_9 = arith.constant 0 : index
    %c0_10 = arith.constant 0 : index
    %15 = vector.load %arg5[%c0_9, %c0_10] : memref<1x128xf32, #tpu.memory_space<vmem>>, vector<1x128xf32>
    %16 = vector.broadcast %15 : vector<1x128xf32> to vector<16x128xf32>
    %17 = arith.addf %14, %16 : vector<16x128xf32>
    %c0_11 = arith.constant 0 : index
    %c0_12 = arith.constant 0 : index
    %18 = vector.load %arg6[%c0_11, %c0_12] : memref<16x128xf32, #tpu.memory_space<vmem>>, vector<16x128xf32>
    tpu.vector_store %arg6[%c0_11, %c0_12], %17 {strides = array<i32>} : memref<16x128xf32, #tpu.memory_space<vmem>>, vector<16x128xf32>,
    return
  }
  func.func @transform_0(%arg0: i32) -> (i32, i32) {
    %c0_i32 = arith.constant 0 : i32
    %c0_i32_0 = arith.constant 0 : i32
    %c0_i32_1 = arith.constant 0 : i32
    return %c0_i32, %c0_i32_0 : i32, i32
  }
  func.func @transform_1(%arg0: i32) -> (i32, i32) {
    %c0_i32 = arith.constant 0 : i32
    %c0_i32_0 = arith.constant 0 : i32
    %c0_i32_1 = arith.constant 0 : i32
    return %c0_i32, %c0_i32_0 : i32, i32
  }
  func.func @transform_2(%arg0: i32) -> (i32, i32) {
    %c0_i32 = arith.constant 0 : i32
    %c0_i32_0 = arith.constant 0 : i32
    %c0_i32_1 = arith.constant 0 : i32
    return %c0_i32, %c0_i32_0 : i32, i32
  }
  func.func @transform_3(%arg0: i32) -> (i32, i32) {
    %c0_i32 = arith.constant 0 : i32
    %c0_i32_0 = arith.constant 0 : i32
    return %c0_i32, %arg0 : i32, i32
  }
  func.func @transform_4(%arg0: i32) -> (i32, i32) {
    %c0_i32 = arith.constant 0 : i32
    %c0_i32_0 = arith.constant 0 : i32
    return %c0_i32, %arg0 : i32, i32
  }
  func.func @transform_5(%arg0: i32) -> (i32, i32) {
    %c0_i32 = arith.constant 0 : i32
    %c0_i32_0 = arith.constant 0 : i32
    return %c0_i32, %arg0 : i32, i32
  }
}

</mosaic_0001>

<llo_original>
// kernel: tpu_custom_call.1
$region0: #{tpu_custom_call.1}
  #allocation0 [shape = 'u32[]', space=smem, size = 0x4, offset = 0x4, fixed_abs, tag = 'smem constant byte address 0x4 - core index']
  #allocation1 [shape = 'u32[144,128]{1,0:T(1,128)}', space=vmem, size = 0x12000, scoped, tag = 'internal scratch']
  %s0 = inlined_call_operand.hbm [shape: bf16[16,32], index: 0, kind: input, shape index: {}]
  %s1 = inlined_call_operand.hbm [shape: bf16[32,128], index: 1, kind: input, shape index: {}]
  %s2 = inlined_call_operand.vmem [shape: f32[1,128], index: 2, kind: input, shape index: {}]
  %s3 = inlined_call_operand.hbm [shape: bf16[128,128], index: 3, kind: input, shape index: {}]
  %s4 = inlined_call_operand.vmem [shape: f32[1,128], index: 4, kind: input, shape index: {}]
  %s5 = inlined_call_operand.hbm [shape: f32[16,128], index: 5, kind: output, shape index: {}]
  %s6 = sld [smem:[#allocation0]]
  $region42: #{tpu_custom_call.1} parent=0
    _
  %s8 = ssub.s32 1, %s6
  %s9 = scalar_select 0, %s8, %s6
  $region1: #{tpu_custom_call.1} parent=0
    #allocation2 [shape = 'u8[4096]{0}', space=vmem, size = 0x1000, scoped, tag = 'input window, operand 0, single buffered']
    #allocation3 [shape = 's32[1]{0}', space=sflag, size = 0x4, scoped, tag = 'scoped memory for tpu_custom_call.1']
    #allocation4 [shape = 's32[1]{0}', space=sflag, size = 0x4, scoped, tag = 'scoped memory for tpu_custom_call.1']
    #allocation5 [shape = 'u8[8192]{0}', space=vmem, size = 0x2000, scoped, tag = 'input window, operand 1, single buffered']
    #allocation6 [shape = 's32[1]{0}', space=sflag, size = 0x4, scoped, tag = 'scoped memory for tpu_custom_call.1']
    #allocation7 [shape = 'u8[32768]{0}', space=vmem, size = 0x8000, scoped, tag = 'input window, operand 3, single buffered']
    #allocation8 [shape = 'u8[8192]{0}', space=vmem, size = 0x2000, scoped, tag = 'output window, operand 0, single buffered']
    %10 = vsyncpa [#allocation3], 0
    %11 = vsyncpa [#allocation6], 0
    %12 = vsyncpa [#allocation4], 0
    // Predicated region
    $region2: #{tpu_custom_call.1} parent=1 // pred_check
      _
    $region3: #{tpu_custom_call.1} parent=1 // pred_check_branch
      %14 = sbr.rel (0) target = $region5
    $region4: #{tpu_custom_call.1} parent=1 // pred_region
      %s16 = ssub.s32 128, 128
      %17 = vsyncadd [#allocation3], %s16
      %s18 = sshll.u32 [#allocation2], 4
      %s19 = int_to_ptr.vmem [resolvable:$true] %s18
      %24 = dma.hbm_to_vmem [thread:$0]  %s0, 128, %s19, [#allocation3], 64, 64, 4
    $region5: #{tpu_custom_call.1} parent=1 // pred_fallthru
      _
    // Predicated region
    $region6: #{tpu_custom_call.1} parent=1 // pred_check
      _
    $region7: #{tpu_custom_call.1} parent=1 // pred_check_branch
      %26 = sbr.rel (0) target = $region9
    $region8: #{tpu_custom_call.1} parent=1 // pred_region
      %s28 = ssub.s32 256, 256
      %29 = vsyncadd [#allocation6], %s28
      %s30 = sshll.u32 [#allocation5], 4
      %s31 = int_to_ptr.vmem [resolvable:$true] %s30
      %36 = dma.hbm_to_vmem [thread:$0]  %s1, 256, %s31, [#allocation6], 64, 64, 4
    $region9: #{tpu_custom_call.1} parent=1 // pred_fallthru
      _
    // Predicated region
    $region10: #{tpu_custom_call.1} parent=1 // pred_check
      _
    $region11: #{tpu_custom_call.1} parent=1 // pred_check_branch
      %38 = sbr.rel (0) target = $region13
    $region12: #{tpu_custom_call.1} parent=1 // pred_region
      _
    $region13: #{tpu_custom_call.1} parent=1 // pred_fallthru
      _
    // Predicated region
    $region14: #{tpu_custom_call.1} parent=1 // pred_check
      _
    $region15: #{tpu_custom_call.1} parent=1 // pred_check_branch
      %40 = sbr.rel (0) target = $region17
    $region16: #{tpu_custom_call.1} parent=1 // pred_region
      %s42 = ssub.s32 1024, 1024
      %43 = vsyncadd [#allocation6], %s42
      %s44 = sshll.u32 [#allocation7], 4
      %s45 = int_to_ptr.vmem [resolvable:$true] %s44
      %50 = dma.hbm_to_vmem [thread:$0]  %s3, 1024, %s45, [#allocation6], 64, 64, 4
    $region17: #{tpu_custom_call.1} parent=1 // pred_fallthru
      _
    // Predicated region
    $region18: #{tpu_custom_call.1} parent=1 // pred_check
      _
    $region19: #{tpu_custom_call.1} parent=1 // pred_check_branch
      %52 = sbr.rel (0) target = $region21
    $region20: #{tpu_custom_call.1} parent=1 // pred_region
      _
    $region21: #{tpu_custom_call.1} parent=1 // pred_fallthru
      _
    // Predicated region
    $region22: #{tpu_custom_call.1} parent=1 // pred_check
      _
    $region23: #{tpu_custom_call.1} parent=1 // pred_check_branch
      %54 = sbr.rel (0) target = $region25
    $region24: #{tpu_custom_call.1} parent=1 // pred_region
      %55 = dma.done [#allocation3], 128
    $region25: #{tpu_custom_call.1} parent=1 // pred_fallthru
      _
    // Predicated region
    $region26: #{tpu_custom_call.1} parent=1 // pred_check
      _
    $region27: #{tpu_custom_call.1} parent=1 // pred_check_branch
      %57 = sbr.rel (0) target = $region29
    $region28: #{tpu_custom_call.1} parent=1 // pred_region
      %58 = dma.done [#allocation6], 256
    $region29: #{tpu_custom_call.1} parent=1 // pred_fallthru
      _
    // Predicated region
    $region30: #{tpu_custom_call.1} parent=1 // pred_check
      _
    $region31: #{tpu_custom_call.1} parent=1 // pred_check_branch
      %60 = sbr.rel (0) target = $region33
    $region32: #{tpu_custom_call.1} parent=1 // pred_region
      %61 = dma.done [#allocation6], 1024
    $region33: #{tpu_custom_call.1} parent=1 // pred_fallthru
      _
    %v63 = vld [vmem:[#allocation2] sm:$0xf]
    %v64 = vld [vmem:[#allocation2 + $0x4] sm:$0xf]
    %v65 = vld [vmem:[#allocation5] sm:$0xf]
    %v66 = vld [vmem:[#allocation5 + $0x4] sm:$0xf]
    %v67 = vld [vmem:[#allocation5 + $0x8] sm:$0xf]
    %v68 = vld [vmem:[#allocation5 + $0xc] sm:$0xf]
    %v69 = vld [vmem:[%s2] sm:$0x1]
    %v71 = vlaneseq
    %v72 = vshrl.u32 %v71, 7
    %v73 = vsub.s32 0, %v72
    %v74 = vrot.slane %v69, %v73
    %v78 = vunpack.c.l.b16 %v63
    %v79 = vunpack.c.l.b16 %v64
    %v80 = vpack.c.b16 %v79, %v78
    %v85 = vunpack.c.l.b16 %v65
    %v86 = vunpack.c.l.b16 %v66
    %v87 = vunpack.c.l.b16 %v67
    %v88 = vunpack.c.l.b16 %v68
    %v89 = vpack.c.b16 %v86, %v85
    %v90 = vpack.c.b16 %v88, %v87
    %vm93 = vcmask 261120
    %v95 = vsel %vm93, %v80, 0
    %97 = vmatprep.subr.bf16.mxu0 0
    %98 = vmatpush1.bf16.msra.mxu0 0
    %99 = vmatprep.subr.bf16.mxu0 0
    %100 = vmatpush1.bf16.msra.mxu0 0
    %101 = vmatprep.subr.bf16.mxu0 0
    %102 = vmatpush1.bf16.msra.mxu0 0
    %103 = vmatprep.subr.bf16.mxu0 0
    %104 = vmatpush1.bf16.msra.mxu0 0
    %105 = vmatprep.subr.bf16.mxu0 0
    %106 = vmatpush1.bf16.msra.mxu0 0
    %107 = vmatprep.subr.bf16.mxu0 0
    %108 = vmatpush1.bf16.msra.mxu0 0
    %109 = vmatprep.subr.bf16.mxu0 0
    %110 = vmatpush1.bf16.msra.mxu0 %v90
    %111 = vmatprep.subr.bf16.mxu0 0
    %112 = vmatpush1.bf16.msra.mxu0 %v89
    %113 = vmatprep.subr.bf16.mxu0 0
    %114 = vmatpush2.bf16.msra.mxu0 0
    %115 = vmatprep.subr.bf16.mxu0 0
    %116 = vmatpush2.bf16.msra.mxu0 0
    %117 = vmatprep.subr.bf16.mxu0 0
    %118 = vmatpush2.bf16.msra.mxu0 0
    %119 = vmatprep.subr.bf16.mxu0 0
    %120 = vmatpush2.bf16.msra.mxu0 0
    %121 = vmatprep.subr.bf16.mxu0 0
    %122 = vmatpush2.bf16.msra.mxu0 0
    %123 = vmatprep.subr.bf16.mxu0 0
    %124 = vmatpush2.bf16.msra.mxu0 0
    %125 = vmatprep.subr.bf16.mxu0 0
    %126 = vmatpush2.bf16.msra.mxu0 0
    %127 = vmatprep.subr.bf16.mxu0 0
    %128 = vmatpush2.bf16.msra.mxu0 0
    %129 = vmatprep.mubr.bf16.mxu0 0
    %130 = vmatmul.mubr.bf16.gmra.mxu0 %v95
    %v131 = vpop.f32.mrf.mxu0
    %v132 = vadd.f32 %v74, %v131
    %v133 = vpop.f32.mrf.mxu0
    %v134 = vpop.f32.mrf.mxu0
    %v135 = vadd.f32 %v74, %v134
    %v136 = vpop.f32.mrf.mxu0
    %137 = vdwg.mxu0
    %v138 = vxor.u32 %v132, 2147483648
    %v139 = vxor.u32 %v135, 2147483648
    %v140 = vmul.f32 %v138, 1.442695
    %v141 = vpow.pop %v140
    %v142 = vmul.f32 %v139, 1.442695
    %v143 = vpow.pop %v142
    %v144 = vadd.f32 %v141, 1.0
    %v145 = vadd.f32 %v143, 1.0
    %v146 = vrcp.pop %v144
    %v147 = vmul.f32 1.0, %v146
    %v148 = vrcp.pop %v145
    %v149 = vmul.f32 1.0, %v148
    %v150 = vmul.f32 %v132, %v147
    %v151 = vmul.f32 %v135, %v149
    %v152 = vpack.c.bf16 %v151, %v150
    %v153 = vld [vmem:[#allocation7] sm:$0xf]
    %v154 = vld [vmem:[#allocation7 + $0x4] sm:$0xf]
    %v155 = vld [vmem:[#allocation7 + $0x8] sm:$0xf]
    %v156 = vld [vmem:[#allocation7 + $0xc] sm:$0xf]
    %v157 = vld [vmem:[#allocation7 + $0x10] sm:$0xf]
    %v158 = vld [vmem:[#allocation7 + $0x14] sm:$0xf]
    %v159 = vld [vmem:[#allocation7 + $0x18] sm:$0xf]
    %v160 = vld [vmem:[#allocation7 + $0x1c] sm:$0xf]
    %v161 = vld [vmem:[#allocation7 + $0x20] sm:$0xf]
    %v162 = vld [vmem:[#allocation7 + $0x24] sm:$0xf]
    %v163 = vld [vmem:[#allocation7 + $0x28] sm:$0xf]
    %v164 = vld [vmem:[#allocation7 + $0x2c] sm:$0xf]
    %v165 = vld [vmem:[#allocation7 + $0x30] sm:$0xf]
    %v166 = vld [vmem:[#allocation7 + $0x34] sm:$0xf]
    %v167 = vld [vmem:[#allocation7 + $0x38] sm:$0xf]
    %v168 = vld [vmem:[#allocation7 + $0x3c] sm:$0xf]
    %v169 = vld [vmem:[%s4] sm:$0x1]
    %v171 = vlaneseq
    %v172 = vshrl.u32 %v171, 7
    %v173 = vsub.s32 0, %v172
    %v174 = vrot.slane %v169, %v173
    %v192 = vunpack.c.l.b16 %v153
    %v193 = vunpack.c.l.b16 %v154
    %v194 = vunpack.c.l.b16 %v155
    %v195 = vunpack.c.l.b16 %v156
    %v196 = vunpack.c.l.b16 %v157
    %v197 = vunpack.c.l.b16 %v158
    %v198 = vunpack.c.l.b16 %v159
    %v199 = vunpack.c.l.b16 %v160
    %v200 = vunpack.c.l.b16 %v161
    %v201 = vunpack.c.l.b16 %v162
    %v202 = vunpack.c.l.b16 %v163
    %v203 = vunpack.c.l.b16 %v164
    %v204 = vunpack.c.l.b16 %v165
    %v205 = vunpack.c.l.b16 %v166
    %v206 = vunpack.c.l.b16 %v167
    %v207 = vunpack.c.l.b16 %v168
    %v208 = vpack.c.b16 %v193, %v192
    %v209 = vpack.c.b16 %v195, %v194
    %v210 = vpack.c.b16 %v197, %v196
    %v211 = vpack.c.b16 %v199, %v198
    %v212 = vpack.c.b16 %v201, %v200
    %v213 = vpack.c.b16 %v203, %v202
    %v214 = vpack.c.b16 %v205, %v204
    %v215 = vpack.c.b16 %v207, %v206
    %224 = vmatprep.subr.bf16.mxu0 0
    %225 = vmatpush1.bf16.msra.mxu0 %v215
    %226 = vmatprep.subr.bf16.mxu0 0
    %227 = vmatpush1.bf16.msra.mxu0 %v214
    %228 = vmatprep.subr.bf16.mxu0 0
    %229 = vmatpush1.bf16.msra.mxu0 %v213
    %230 = vmatprep.subr.bf16.mxu0 0
    %231 = vmatpush1.bf16.msra.mxu0 %v212
    %232 = vmatprep.subr.bf16.mxu0 0
    %233 = vmatpush1.bf16.msra.mxu0 %v211
    %234 = vmatprep.subr.bf16.mxu0 0
    %235 = vmatpush1.bf16.msra.mxu0 %v210
    %236 = vmatprep.subr.bf16.mxu0 0
    %237 = vmatpush1.bf16.msra.mxu0 %v209
    %238 = vmatprep.subr.bf16.mxu0 0
    %239 = vmatpush1.bf16.msra.mxu0 %v208
    %240 = vmatprep.subr.bf16.mxu0 0
    %241 = vmatpush2.bf16.msra.mxu0 0
    %242 = vmatprep.subr.bf16.mxu0 0
    %243 = vmatpush2.bf16.msra.mxu0 0
    %244 = vmatprep.subr.bf16.mxu0 0
    %245 = vmatpush2.bf16.msra.mxu0 0
    %246 = vmatprep.subr.bf16.mxu0 0
    %247 = vmatpush2.bf16.msra.mxu0 0
    %248 = vmatprep.subr.bf16.mxu0 0
    %249 = vmatpush2.bf16.msra.mxu0 0
    %250 = vmatprep.subr.bf16.mxu0 0
    %251 = vmatpush2.bf16.msra.mxu0 0
    %252 = vmatprep.subr.bf16.mxu0 0
    %253 = vmatpush2.bf16.msra.mxu0 0
    %254 = vmatprep.subr.bf16.mxu0 0
    %255 = vmatpush2.bf16.msra.mxu0 0
    %256 = vmatprep.mubr.bf16.mxu0 0
    %257 = vmatmul.mubr.bf16.gmra.mxu0 %v152
    %v258 = vpop.f32.mrf.mxu0
    %v259 = vadd.f32 %v174, %v258
    %v260 = vpop.f32.mrf.mxu0
    %v261 = vpop.f32.mrf.mxu0
    %v262 = vadd.f32 %v174, %v261
    %v263 = vpop.f32.mrf.mxu0
    %264 = vdwg.mxu0
    %265 = vst [vmem:[#allocation8] sm:$0xff] %v259
    %266 = vst [vmem:[#allocation8 + $0x8] sm:$0xff] %v262
    // Predicated region
    $region34: #{tpu_custom_call.1} parent=1 // pred_check
      _
    $region35: #{tpu_custom_call.1} parent=1 // pred_check_branch
      %268 = sbr.rel (0) target = $region37
    $region36: #{tpu_custom_call.1} parent=1 // pred_region
      %s270 = ssub.s32 256, 256
      %271 = vsyncadd [#allocation4], %s270
      %s272 = sshll.u32 [#allocation8], 4
      %s273 = int_to_ptr.vmem [resolvable:$true] %s272
      %278 = dma.vmem_to_hbm [thread:$0]  %s273, 256, %s5, [#allocation4], 128, 128, 8
    $region37: #{tpu_custom_call.1} parent=1 // pred_fallthru
      _
    // Predicated region
    $region38: #{tpu_custom_call.1} parent=1 // pred_check
      _
    $region39: #{tpu_custom_call.1} parent=1 // pred_check_branch
      %280 = sbr.rel (0) target = $region41
    $region40: #{tpu_custom_call.1} parent=1 // pred_region
      %281 = dma.done [#allocation4], 256
    $region41: #{tpu_custom_call.1} parent=1 // pred_fallthru
      _
    %282 = vsyncpa [#allocation3], 1
    %283 = vsyncpa [#allocation6], 1
    %284 = vsyncpa [#allocation4], 1

// kernel: tpu_custom_call.1
$region0: #{tpu_custom_call.1}
  #allocation0 [shape = 'u32[]', space=smem, size = 0x4, offset = 0x4, fixed_abs, tag = 'smem constant byte address 0x4 - core index']
  #allocation1 [shape = 'u32[144,128]{1,0:T(1,128)}', space=vmem, size = 0x12000, scoped, tag = 'internal scratch']
  %s0 = inlined_call_operand.hbm [shape: bf16[16,32], index: 0, kind: input, shape index: {}]
  %s1 = inlined_call_operand.hbm [shape: bf16[32,128], index: 1, kind: input, shape index: {}]
  %s2 = inlined_call_operand.vmem [shape: f32[1,128], index: 2, kind: input, shape index: {}]
  %s3 = inlined_call_operand.hbm [shape: bf16[128,128], index: 3, kind: input, shape index: {}]
  %s4 = inlined_call_operand.vmem [shape: f32[1,128], index: 4, kind: input, shape index: {}]
  %s5 = inlined_call_operand.hbm [shape: f32[16,128], index: 5, kind: output, shape index: {}]
  %s6 = sld [smem:[#allocation0]]
  $region42: #{tpu_custom_call.1} parent=0
    _
  %s8 = ssub.s32 1, %s6
  %s9 = scalar_select 0, %s8, %s6
  $region1: #{tpu_custom_call.1} parent=0
    #allocation2 [shape = 'u8[4096]{0}', space=vmem, size = 0x1000, scoped, tag = 'input window, operand 0, single buffered']
    #allocation3 [shape = 's32[1]{0}', space=sflag, size = 0x4, scoped, tag = 'scoped memory for tpu_custom_call.1']
    #allocation4 [shape = 's32[1]{0}', space=sflag, size = 0x4, scoped, tag = 'scoped memory for tpu_custom_call.1']
    #allocation5 [shape = 'u8[8192]{0}', space=vmem, size = 0x2000, scoped, tag = 'input window, operand 1, single buffered']
    #allocation6 [shape = 's32[1]{0}', space=sflag, size = 0x4, scoped, tag = 'scoped memory for tpu_custom_call.1']
    #allocation7 [shape = 'u8[32768]{0}', space=vmem, size = 0x8000, scoped, tag = 'input window, operand 3, single buffered']
    #allocation8 [shape = 'u8[8192]{0}', space=vmem, size = 0x2000, scoped, tag = 'output window, operand 0, single buffered']
    %10 = vsyncpa [#allocation3], 0
    %11 = vsyncpa [#allocation6], 0
    %12 = vsyncpa [#allocation4], 0
    // Predicated region
    $region2: #{tpu_custom_call.1} parent=1 // pred_check
      _
    $region3: #{tpu_custom_call.1} parent=1 // pred_check_branch
      %14 = sbr.rel (0) target = $region5
    $region4: #{tpu_custom_call.1} parent=1 // pred_region
      %s16 = ssub.s32 128, 128
      %17 = vsyncadd [#allocation3], %s16
      %s18 = sshll.u32 [#allocation2], 4
      %s19 = int_to_ptr.vmem [resolvable:$true] %s18
      %24 = dma.hbm_to_vmem [thread:$0]  %s0, 128, %s19, [#allocation3], 64, 64, 4
    $region5: #{tpu_custom_call.1} parent=1 // pred_fallthru
      _
    // Predicated region
    $region6: #{tpu_custom_call.1} parent=1 // pred_check
      _
    $region7: #{tpu_custom_call.1} parent=1 // pred_check_branch
      %26 = sbr.rel (0) target = $region9
    $region8: #{tpu_custom_call.1} parent=1 // pred_region
      %s28 = ssub.s32 256, 256
      %29 = vsyncadd [#allocation6], %s28
      %s30 = sshll.u32 [#allocation5], 4
      %s31 = int_to_ptr.vmem [resolvable:$true] %s30
      %36 = dma.hbm_to_vmem [thread:$0]  %s1, 256, %s31, [#allocation6], 64, 64, 4
    $region9: #{tpu_custom_call.1} parent=1 // pred_fallthru
      _
    // Predicated region
    $region10: #{tpu_custom_call.1} parent=1 // pred_check
      _
    $region11: #{tpu_custom_call.1} parent=1 // pred_check_branch
      %38 = sbr.rel (0) target = $region13
    $region12: #{tpu_custom_call.1} parent=1 // pred_region
      _
    $region13: #{tpu_custom_call.1} parent=1 // pred_fallthru
      _
    // Predicated region
    $region14: #{tpu_custom_call.1} parent=1 // pred_check
      _
    $region15: #{tpu_custom_call.1} parent=1 // pred_check_branch
      %40 = sbr.rel (0) target = $region17
    $region16: #{tpu_custom_call.1} parent=1 // pred_region
      %s42 = ssub.s32 1024, 1024
      %43 = vsyncadd [#allocation6], %s42
      %s44 = sshll.u32 [#allocation7], 4
      %s45 = int_to_ptr.vmem [resolvable:$true] %s44
      %50 = dma.hbm_to_vmem [thread:$0]  %s3, 1024, %s45, [#allocation6], 64, 64, 4
    $region17: #{tpu_custom_call.1} parent=1 // pred_fallthru
      _
    // Predicated region
    $region18: #{tpu_custom_call.1} parent=1 // pred_check
      _
    $region19: #{tpu_custom_call.1} parent=1 // pred_check_branch
      %52 = sbr.rel (0) target = $region21
    $region20: #{tpu_custom_call.1} parent=1 // pred_region
      _
    $region21: #{tpu_custom_call.1} parent=1 // pred_fallthru
      _
    // Predicated region
    $region22: #{tpu_custom_call.1} parent=1 // pred_check
      _
    $region23: #{tpu_custom_call.1} parent=1 // pred_check_branch
      %54 = sbr.rel (0) target = $region25
    $region24: #{tpu_custom_call.1} parent=1 // pred_region
      %55 = dma.done [#allocation3], 128
    $region25: #{tpu_custom_call.1} parent=1 // pred_fallthru
      _
    // Predicated region
    $region26: #{tpu_custom_call.1} parent=1 // pred_check
      _
    $region27: #{tpu_custom_call.1} parent=1 // pred_check_branch
      %57 = sbr.rel (0) target = $region29
    $region28: #{tpu_custom_call.1} parent=1 // pred_region
      %58 = dma.done [#allocation6], 256
    $region29: #{tpu_custom_call.1} parent=1 // pred_fallthru
      _
    // Predicated region
    $region30: #{tpu_custom_call.1} parent=1 // pred_check
      _
    $region31: #{tpu_custom_call.1} parent=1 // pred_check_branch
      %60 = sbr.rel (0) target = $region33
    $region32: #{tpu_custom_call.1} parent=1 // pred_region
      %61 = dma.done [#allocation6], 1024
    $region33: #{tpu_custom_call.1} parent=1 // pred_fallthru
      _
    %v63 = vld [vmem:[#allocation2] sm:$0xf]
    %v64 = vld [vmem:[#allocation2 + $0x4] sm:$0xf]
    %v65 = vld [vmem:[#allocation5] sm:$0xf]
    %v66 = vld [vmem:[#allocation5 + $0x4] sm:$0xf]
    %v67 = vld [vmem:[#allocation5 + $0x8] sm:$0xf]
    %v68 = vld [vmem:[#allocation5 + $0xc] sm:$0xf]
    %v69 = vld [vmem:[%s2] sm:$0x1]
    %v71 = vlaneseq
    %v72 = vshrl.u32 %v71, 7
    %v73 = vsub.s32 0, %v72
    %v74 = vrot.slane %v69, %v73
    %v78 = vunpack.c.l.b16 %v63
    %v79 = vunpack.c.l.b16 %v64
    %v80 = vpack.c.b16 %v79, %v78
    %v85 = vunpack.c.l.b16 %v65
    %v86 = vunpack.c.l.b16 %v66
    %v87 = vunpack.c.l.b16 %v67
    %v88 = vunpack.c.l.b16 %v68
    %v89 = vpack.c.b16 %v86, %v85
    %v90 = vpack.c.b16 %v88, %v87
    %vm93 = vcmask 261120
    %v95 = vsel %vm93, %v80, 0
    %97 = vmatprep.subr.bf16.mxu0 0
    %98 = vmatpush1.bf16.msra.mxu0 0
    %99 = vmatprep.subr.bf16.mxu0 0
    %100 = vmatpush1.bf16.msra.mxu0 0
    %101 = vmatprep.subr.bf16.mxu0 0
    %102 = vmatpush1.bf16.msra.mxu0 0
    %103 = vmatprep.subr.bf16.mxu0 0
    %104 = vmatpush1.bf16.msra.mxu0 0
    %105 = vmatprep.subr.bf16.mxu0 0
    %106 = vmatpush1.bf16.msra.mxu0 0
    %107 = vmatprep.subr.bf16.mxu0 0
    %108 = vmatpush1.bf16.msra.mxu0 0
    %109 = vmatprep.subr.bf16.mxu0 0
    %110 = vmatpush1.bf16.msra.mxu0 %v90
    %111 = vmatprep.subr.bf16.mxu0 0
    %112 = vmatpush1.bf16.msra.mxu0 %v89
    %113 = vmatprep.subr.bf16.mxu0 0
    %114 = vmatpush2.bf16.msra.mxu0 0
    %115 = vmatprep.subr.bf16.mxu0 0
    %116 = vmatpush2.bf16.msra.mxu0 0
    %117 = vmatprep.subr.bf16.mxu0 0
    %118 = vmatpush2.bf16.msra.mxu0 0
    %119 = vmatprep.subr.bf16.mxu0 0
    %120 = vmatpush2.bf16.msra.mxu0 0
    %121 = vmatprep.subr.bf16.mxu0 0
    %122 = vmatpush2.bf16.msra.mxu0 0
    %123 = vmatprep.subr.bf16.mxu0 0
    %124 = vmatpush2.bf16.msra.mxu0 0
    %125 = vmatprep.subr.bf16.mxu0 0
    %126 = vmatpush2.bf16.msra.mxu0 0
    %127 = vmatprep.subr.bf16.mxu0 0
    %128 = vmatpush2.bf16.msra.mxu0 0
    %129 = vmatprep.mubr.bf16.mxu0 0
    %130 = vmatmul.mubr.bf16.gmra.mxu0 %v95
    %v131 = vpop.f32.mrf.mxu0
    %v132 = vadd.f32 %v74, %v131
    %v133 = vpop.f32.mrf.mxu0
    %v134 = vpop.f32.mrf.mxu0
    %v135 = vadd.f32 %v74, %v134
    %v136 = vpop.f32.mrf.mxu0
    %137 = vdwg.mxu0
    %v138 = vxor.u32 %v132, 2147483648
    %v139 = vxor.u32 %v135, 2147483648
    %v140 = vmul.f32 %v138, 1.442695
    %v141 = vpow.pop %v140
    %v142 = vmul.f32 %v139, 1.442695
    %v143 = vpow.pop %v142
    %v144 = vadd.f32 %v141, 1.0
    %v145 = vadd.f32 %v143, 1.0
    %v146 = vrcp.pop %v144
    %v147 = vmul.f32 1.0, %v146
    %v148 = vrcp.pop %v145
    %v149 = vmul.f32 1.0, %v148
    %v150 = vmul.f32 %v132, %v147
    %v151 = vmul.f32 %v135, %v149
    %v152 = vpack.c.bf16 %v151, %v150
    %v153 = vld [vmem:[#allocation7] sm:$0xf]
    %v154 = vld [vmem:[#allocation7 + $0x4] sm:$0xf]
    %v155 = vld [vmem:[#allocation7 + $0x8] sm:$0xf]
    %v156 = vld [vmem:[#allocation7 + $0xc] sm:$0xf]
    %v157 = vld [vmem:[#allocation7 + $0x10] sm:$0xf]
    %v158 = vld [vmem:[#allocation7 + $0x14] sm:$0xf]
    %v159 = vld [vmem:[#allocation7 + $0x18] sm:$0xf]
    %v160 = vld [vmem:[#allocation7 + $0x1c] sm:$0xf]
    %v161 = vld [vmem:[#allocation7 + $0x20] sm:$0xf]
    %v162 = vld [vmem:[#allocation7 + $0x24] sm:$0xf]
    %v163 = vld [vmem:[#allocation7 + $0x28] sm:$0xf]
    %v164 = vld [vmem:[#allocation7 + $0x2c] sm:$0xf]
    %v165 = vld [vmem:[#allocation7 + $0x30] sm:$0xf]
    %v166 = vld [vmem:[#allocation7 + $0x34] sm:$0xf]
    %v167 = vld [vmem:[#allocation7 + $0x38] sm:$0xf]
    %v168 = vld [vmem:[#allocation7 + $0x3c] sm:$0xf]
    %v169 = vld [vmem:[%s4] sm:$0x1]
    %v171 = vlaneseq
    %v172 = vshrl.u32 %v171, 7
    %v173 = vsub.s32 0, %v172
    %v174 = vrot.slane %v169, %v173
    %v192 = vunpack.c.l.b16 %v153
    %v193 = vunpack.c.l.b16 %v154
    %v194 = vunpack.c.l.b16 %v155
    %v195 = vunpack.c.l.b16 %v156
    %v196 = vunpack.c.l.b16 %v157
    %v197 = vunpack.c.l.b16 %v158
    %v198 = vunpack.c.l.b16 %v159
    %v199 = vunpack.c.l.b16 %v160
    %v200 = vunpack.c.l.b16 %v161
    %v201 = vunpack.c.l.b16 %v162
    %v202 = vunpack.c.l.b16 %v163
    %v203 = vunpack.c.l.b16 %v164
    %v204 = vunpack.c.l.b16 %v165
    %v205 = vunpack.c.l.b16 %v166
    %v206 = vunpack.c.l.b16 %v167
    %v207 = vunpack.c.l.b16 %v168
    %v208 = vpack.c.b16 %v193, %v192
    %v209 = vpack.c.b16 %v195, %v194
    %v210 = vpack.c.b16 %v197, %v196
    %v211 = vpack.c.b16 %v199, %v198
    %v212 = vpack.c.b16 %v201, %v200
    %v213 = vpack.c.b16 %v203, %v202
    %v214 = vpack.c.b16 %v205, %v204
    %v215 = vpack.c.b16 %v207, %v206
    %224 = vmatprep.subr.bf16.mxu0 0
    %225 = vmatpush1.bf16.msra.mxu0 %v215
    %226 = vmatprep.subr.bf16.mxu0 0
    %227 = vmatpush1.bf16.msra.mxu0 %v214
    %228 = vmatprep.subr.bf16.mxu0 0
    %229 = vmatpush1.bf16.msra.mxu0 %v213
    %230 = vmatprep.subr.bf16.mxu0 0
    %231 = vmatpush1.bf16.msra.mxu0 %v212
    %232 = vmatprep.subr.bf16.mxu0 0
    %233 = vmatpush1.bf16.msra.mxu0 %v211
    %234 = vmatprep.subr.bf16.mxu0 0
    %235 = vmatpush1.bf16.msra.mxu0 %v210
    %236 = vmatprep.subr.bf16.mxu0 0
    %237 = vmatpush1.bf16.msra.mxu0 %v209
    %238 = vmatprep.subr.bf16.mxu0 0
    %239 = vmatpush1.bf16.msra.mxu0 %v208
    %240 = vmatprep.subr.bf16.mxu0 0
    %241 = vmatpush2.bf16.msra.mxu0 0
    %242 = vmatprep.subr.bf16.mxu0 0
    %243 = vmatpush2.bf16.msra.mxu0 0
    %244 = vmatprep.subr.bf16.mxu0 0
    %245 = vmatpush2.bf16.msra.mxu0 0
    %246 = vmatprep.subr.bf16.mxu0 0
    %247 = vmatpush2.bf16.msra.mxu0 0
    %248 = vmatprep.subr.bf16.mxu0 0
    %249 = vmatpush2.bf16.msra.mxu0 0
    %250 = vmatprep.subr.bf16.mxu0 0
    %251 = vmatpush2.bf16.msra.mxu0 0
    %252 = vmatprep.subr.bf16.mxu0 0
    %253 = vmatpush2.bf16.msra.mxu0 0
    %254 = vmatprep.subr.bf16.mxu0 0
    %255 = vmatpush2.bf16.msra.mxu0 0
    %256 = vmatprep.mubr.bf16.mxu0 0
    %257 = vmatmul.mubr.bf16.gmra.mxu0 %v152
    %v258 = vpop.f32.mrf.mxu0
    %v259 = vadd.f32 %v174, %v258
    %v260 = vpop.f32.mrf.mxu0
    %v261 = vpop.f32.mrf.mxu0
    %v262 = vadd.f32 %v174, %v261
    %v263 = vpop.f32.mrf.mxu0
    %264 = vdwg.mxu0
    %265 = vst [vmem:[#allocation8] sm:$0xff] %v259
    %266 = vst [vmem:[#allocation8 + $0x8] sm:$0xff] %v262
    // Predicated region
    $region34: #{tpu_custom_call.1} parent=1 // pred_check
      _
    $region35: #{tpu_custom_call.1} parent=1 // pred_check_branch
      %268 = sbr.rel (0) target = $region37
    $region36: #{tpu_custom_call.1} parent=1 // pred_region
      %s270 = ssub.s32 256, 256
      %271 = vsyncadd [#allocation4], %s270
      %s272 = sshll.u32 [#allocation8], 4
      %s273 = int_to_ptr.vmem [resolvable:$true] %s272
      %278 = dma.vmem_to_hbm [thread:$0]  %s273, 256, %s5, [#allocation4], 128, 128, 8
    $region37: #{tpu_custom_call.1} parent=1 // pred_fallthru
      _
    // Predicated region
    $region38: #{tpu_custom_call.1} parent=1 // pred_check
      _
    $region39: #{tpu_custom_call.1} parent=1 // pred_check_branch
      %280 = sbr.rel (0) target = $region41
    $region40: #{tpu_custom_call.1} parent=1 // pred_region
      %281 = dma.done [#allocation4], 256
    $region41: #{tpu_custom_call.1} parent=1 // pred_fallthru
      _
    %282 = vsyncpa [#allocation3], 1
    %283 = vsyncpa [#allocation6], 1
    %284 = vsyncpa [#allocation4], 1

</llo_original>
